<compile_context>
chip_gen: v7x
topology: tpu7x:2x2x1
jax: 0.10.0
libtpu: 0.0.40
codegen_flags: <defaults>
</compile_context>

<pallas_src>
import functools
import math

import jax
import jax.numpy as jnp
import numpy as np
from jax.experimental import pallas as pl
from jax.experimental.pallas import tpu as pltpu

EPS = 1e-5
KSIZE = 3
PAD = 1


def _round_up(x, m):
    return (x + m - 1) // m * m


def _decoupled_conv_kernel(patches_ref, w_ref, params_ref, out_ref,
                           s1_ref, s2_ref, scale_ref, shift_ref, *, inv_m):
    # patches_ref: (9C, TM)   bf16 lane-dense im2col tile (columns = flattened N*H*W)
    # w_ref:       (C3p, 9C)  bf16 fused conv weights (rows = branch*C + co, zero-padded)
    # params_ref:  (C3p, 3)   f32 columns = [gamma | beta | prelu_alpha]
    # out_ref:     (C3p, TM)  f32
    # s1/s2:       per-row running sums (persist across grid steps)
    # scale/shift: folded BN affine, produced at the end of phase 0, consumed in phase 1
    phase = pl.program_id(0)
    j = pl.program_id(1)
    nj = pl.num_programs(1)

    # 3x3 conv for all three branches as ONE MXU matmul; bf16 operands, f32 accumulation.
    y = jnp.dot(w_ref[...], patches_ref[...], preferred_element_type=jnp.float32)

    @pl.when(jnp.logical_and(phase == 0, j == 0))
    def _init():
        s1_ref[...] = jnp.zeros_like(s1_ref)
        s2_ref[...] = jnp.zeros_like(s2_ref)

    @pl.when(phase == 0)
    def _accumulate():
        # Global BN statistics over all of N*H*W.  Padded columns are all-zero and the conv
        # bias is folded out, so they contribute exactly zero to both sums.
        s1_ref[...] += jnp.sum(y, axis=1, keepdims=True)
        s2_ref[...] += jnp.sum(y * y, axis=1, keepdims=True)

    @pl.when(jnp.logical_and(phase == 0, j == nj - 1))
    def _fold():
        mu = s1_ref[...] * inv_m
        # Single-pass variance can dip slightly negative in f32 under cancellation: clamp.
        var = jnp.maximum(s2_ref[...] * inv_m - mu * mu, 0.0)
        gamma = params_ref[:, 0:1]
        beta = params_ref[:, 1:2]
        scale = gamma * jax.lax.rsqrt(var + EPS)      # EUP rsqrt; folded BN scale
        scale_ref[...] = scale
        shift_ref[...] = beta - mu * scale            # folded BN shift

    @pl.when(phase == 1)
    def _apply():
        alpha = params_ref[:, 2:3]
        z = y * scale_ref[...] + shift_ref[...]       # normalize + affine in one FMA
        out_ref[...] = jnp.where(z > 0, z, alpha * z).astype(out_ref.dtype)


def decoupled_convolution(x_nchw, w_all, b_all, gamma_all, beta_all, alpha_all, *, tm=2048):
    """x_nchw: (N, C, H, W) float32.
    w_all: (3, C_out, C_in, k, k)  (PyTorch OIHW per branch, stacked)
    b_all, gamma_all, beta_all: (3, C);  alpha_all: (3,)
    Returns a tuple of three (N, C, H, W) float32 arrays."""
    N, C, H, W = x_nchw.shape
    M = N * H * W
    K9 = KSIZE * KSIZE * C
    C3 = 3 * C
    C3p = _round_up(C3, 8)                      # sublane-friendly output rows

    tm = min(_round_up(tm, 128), _round_up(M, 128))
    m_pad = _round_up(M, tm)
    num_tiles = m_pad // tm

    # bf16 MXU operands; f32 accumulation happens inside the kernel.
    x_nhwc = jnp.transpose(x_nchw, (0, 2, 3, 1)).astype(jnp.bfloat16)
    xp = jnp.pad(x_nhwc, ((0, 0), (PAD, PAD), (PAD, PAD), (0, 0)))

    # Lane-dense im2col: row index = (kh*3+kw)*C + ci, column index = flattened (n,h,w).
    windows = jnp.stack(
        [xp[:, kh:kh + H, kw:kw + W, :] for kh in range(KSIZE) for kw in range(KSIZE)],
        axis=0)                                                     # (9, N, H, W, C)
    patches_t = jnp.transpose(windows, (0, 4, 1, 2, 3)).reshape(K9, M)
    patches_t = jnp.pad(patches_t, ((0, 0), (0, m_pad - M)))        # zero cols: stat-neutral

    # OIHW per branch -> (3C, 9C), column order matching the patch-row order; pad rows.
    w_mat = jnp.transpose(w_all, (0, 1, 3, 4, 2)).reshape(C3, K9).astype(jnp.bfloat16)
    w_mat = jnp.pad(w_mat, ((0, C3p - C3), (0, 0)))

    # Conv bias dropped: exactly cancelled by training-mode BN mean subtraction.
    del b_all

    gamma_rows = jnp.pad(gamma_all.reshape(C3).astype(jnp.float32), (0, C3p - C3),
                         constant_values=1.0)
    beta_rows = jnp.pad(beta_all.reshape(C3).astype(jnp.float32), (0, C3p - C3))
    alpha_rows = jnp.pad(jnp.repeat(alpha_all.astype(jnp.float32), C), (0, C3p - C3))
    params = jnp.stack([gamma_rows, beta_rows, alpha_rows], axis=1)  # (C3p, 3)

    kernel = functools.partial(_decoupled_conv_kernel, inv_m=1.0 / float(M))

    out = pl.pallas_call(
        kernel,
        out_shape=jax.ShapeDtypeStruct((C3p, m_pad), jnp.float32),
        grid=(2, num_tiles),                       # (phase, M tile)
        in_specs=[
            pl.BlockSpec((K9, tm), lambda p, j: (0, j)),
            pl.BlockSpec((C3p, K9), lambda p, j: (0, 0)),
            pl.BlockSpec((C3p, 3), lambda p, j: (0, 0)),
        ],
        # Phase 0 parks the output on block 0 (never flushed before phase 1 overwrites it);
        # phase 1 streams the real tiles -> each output block hits HBM exactly once.
        out_specs=pl.BlockSpec((C3p, tm), lambda p, j: (0, j * p)),
        scratch_shapes=[
            pltpu.VMEM((C3p, 1), jnp.float32),     # s1  (Σ y)
            pltpu.VMEM((C3p, 1), jnp.float32),     # s2  (Σ y²)
            pltpu.VMEM((C3p, 1), jnp.float32),     # folded BN scale
            pltpu.VMEM((C3p, 1), jnp.float32),     # folded BN shift
        ],
        compiler_params=pltpu.CompilerParams(
            dimension_semantics=("arbitrary", "arbitrary")),
    )(patches_t, w_mat, params)

    # (C3p, m_pad) -> (3, C, N, H, W) -> (3, N, C, H, W); H,W stay contiguous.
    out = out[:C3, :M].reshape(3, C, N, H, W)
    out = jnp.transpose(out, (0, 2, 1, 3, 4))
    return out[0], out[1], out[2]


def _reference_branch(x_nchw, w_oihw, bias, gamma, beta, alpha):
    """Pure-JAX f32 reference for one branch (conv + training-mode BN + PReLU)."""
    y = jax.lax.conv_general_dilated(
        x_nchw, w_oihw, window_strides=(1, 1), padding=((PAD, PAD), (PAD, PAD)),
        dimension_numbers=("NCHW", "OIHW", "NCHW"))
    y = y + bias[None, :, None, None]
    mu = jnp.mean(y, axis=(0, 2, 3), keepdims=True)
    var = jnp.mean((y - mu) ** 2, axis=(0, 2, 3), keepdims=True)
    yn = (y - mu) * jax.lax.rsqrt(var + EPS)
    z = yn * gamma[None, :, None, None] + beta[None, :, None, None]
    return jnp.where(z > 0, z, alpha * z)


if __name__ == "__main__":
    N, C, H, W = 2, 4, 16, 16

    key = jax.random.PRNGKey(0)
    k_x, k_w, k_b, k_g, k_bt = jax.random.split(key, 5)

    x = jax.random.normal(k_x, (N, C, H, W), jnp.float32)

    # Deterministic parameter init (shapes per nn.Conv2d / nn.BatchNorm2d / nn.PReLU).
    fan_in = C * KSIZE * KSIZE
    bound = 1.0 / math.sqrt(fan_in)
    w_all = jax.random.uniform(k_w, (3, C, C, KSIZE, KSIZE), jnp.float32, -bound, bound)
    b_all = jax.random.uniform(k_b, (3, C), jnp.float32, -bound, bound)
    gamma_all = 1.0 + 0.1 * jax.random.normal(k_g, (3, C), jnp.float32)
    beta_all = 0.1 * jax.random.normal(k_bt, (3, C), jnp.float32)
    alpha_all = jnp.full((3,), 0.25, jnp.float32)   # PReLU default init

    # tm=128 so the multi-tile two-phase path (init / accumulate / fold / apply) is exercised.
    outs = decoupled_convolution(x, w_all, b_all, gamma_all, beta_all, alpha_all, tm=128)
    outs = jax.block_until_ready(outs)

    # Tolerance absorbs bf16 operand rounding (review-requested) on top of MXU-vs-XLA conv
    # precision; post-BN values are O(1), so 2e-2 is a comfortable bound.
    for i in range(3):
        ref = _reference_branch(x, w_all[i], b_all[i], gamma_all[i], beta_all[i], alpha_all[i])
        np.testing.assert_allclose(np.asarray(outs[i]), np.asarray(ref), rtol=2e-2, atol=2e-2)

    print("KERNEL_OK")
</pallas_src>

<mosaic_0001>
module attributes {stable_mosaic.version = 11 : i64} {
  func.func @_decoupled_conv_kernel(%arg0: i32, %arg1: i32, %arg2: memref<36x128xbf16, #tpu.memory_space<vmem>>, %arg3: memref<16x36xbf16, #tpu.memory_space<vmem>>, %arg4: memref<16x3xf32, #tpu.memory_space<vmem>>, %arg5: memref<16x128xf32, #tpu.memory_space<vmem>>, %arg6: memref<16x1xf32, #tpu.memory_space<vmem>>, %arg7: memref<16x1xf32, #tpu.memory_space<vmem>>, %arg8: memref<16x1xf32, #tpu.memory_space<vmem>>, %arg9: memref<16x1xf32, #tpu.memory_space<vmem>>) attributes {dimension_semantics = [#tpu.dimension_semantics<arbitrary>, #tpu.dimension_semantics<arbitrary>], iteration_bounds = array<i64: 2, 4>, scalar_prefetch = 0 : i64, scratch_operands = 4 : i64, tpu.core_type = #tpu.core_type<tc>, window_params = [{transform_indices = @transform_0, window_bounds = array<i64: 36, 128>}, {pipeline_mode = #tpu.pipeline_mode<synchronous>, transform_indices = @transform_1, window_bounds = array<i64: 16, 36>}, {pipeline_mode = #tpu.pipeline_mode<synchronous>, transform_indices = @transform_2, window_bounds = array<i64: 16, 3>}, {transform_indices = @transform_3, window_bounds = array<i64: 16, 128>}]} {
    %c0 = arith.constant 0 : index
    %c0_0 = arith.constant 0 : index
    %0 = vector.load %arg3[%c0, %c0_0] : memref<16x36xbf16, #tpu.memory_space<vmem>>, vector<16x36xbf16>
    %c0_1 = arith.constant 0 : index
    %c0_2 = arith.constant 0 : index
    %1 = vector.load %arg2[%c0_1, %c0_2] : memref<36x128xbf16, #tpu.memory_space<vmem>>, vector<36x128xbf16>
    %cst = arith.constant dense<0.000000e+00> : vector<16x128xf32>
    %2 = tpu.matmul %0, %1, %cst {dimension_numbers = #tpu.dot_dimension_numbers<[1], [0], [0], [1], [0, 0, 1, 1], [], []>} : vector<16x36xbf16>, vector<36x128xbf16>, vector<16x128xf32> -> vector<16x128xf32>
    %c0_i32 = arith.constant 0 : i32
    %3 = arith.cmpi eq, %arg0, %c0_i32 : i32
    %c0_i32_3 = arith.constant 0 : i32
    %4 = arith.cmpi eq, %arg1, %c0_i32_3 : i32
    %5 = arith.andi %3, %4 : i1
    %6 = arith.extui %5 : i1 to i32
    %c0_i32_4 = arith.constant 0 : i32
    %7 = arith.cmpi ne, %6, %c0_i32_4 : i32
    scf.if %7 {
      %cst_10 = arith.constant 0.000000e+00 : f32
      %19 = vector.broadcast %cst_10 : f32 to vector<16x1xf32>
      %c0_11 = arith.constant 0 : index
      %c0_12 = arith.constant 0 : index
      %20 = vector.load %arg6[%c0_11, %c0_12] : memref<16x1xf32, #tpu.memory_space<vmem>>, vector<16x1xf32>
      tpu.vector_store %arg6[%c0_11, %c0_12], %19 {strides = array<i32>} : memref<16x1xf32, #tpu.memory_space<vmem>>, vector<16x1xf32>,
      %cst_13 = arith.constant 0.000000e+00 : f32
      %21 = vector.broadcast %cst_13 : f32 to vector<16x1xf32>
      %c0_14 = arith.constant 0 : index
      %c0_15 = arith.constant 0 : index
      %22 = vector.load %arg7[%c0_14, %c0_15] : memref<16x1xf32, #tpu.memory_space<vmem>>, vector<16x1xf32>
      tpu.vector_store %arg7[%c0_14, %c0_15], %21 {strides = array<i32>} : memref<16x1xf32, #tpu.memory_space<vmem>>, vector<16x1xf32>,
    } else {
    }
    %c0_i32_5 = arith.constant 0 : i32
    %8 = arith.cmpi eq, %arg0, %c0_i32_5 : i32
    %9 = arith.extui %8 : i1 to i32
    %c0_i32_6 = arith.constant 0 : i32
    %10 = arith.cmpi ne, %9, %c0_i32_6 : i32
    scf.if %10 {
      %c0_10 = arith.constant 0 : index
      %c0_11 = arith.constant 0 : index
      %19 = vector.load %arg6[%c0_10, %c0_11] : memref<16x1xf32, #tpu.memory_space<vmem>>, vector<16x1xf32>
      %cst_12 = arith.constant dense<0.000000e+00> : vector<16xf32>
      %20 = vector.multi_reduction <add>, %2, %cst_12 [1] : vector<16x128xf32> to vector<16xf32>
      %21 = vector.shape_cast %20 : vector<16xf32> to vector<16x1xf32>
      %22 = arith.addf %19, %21 : vector<16x1xf32>
      %c0_13 = arith.constant 0 : index
      %c0_14 = arith.constant 0 : index
      %23 = vector.load %arg6[%c0_13, %c0_14] : memref<16x1xf32, #tpu.memory_space<vmem>>, vector<16x1xf32>
      tpu.vector_store %arg6[%c0_13, %c0_14], %22 {strides = array<i32>} : memref<16x1xf32, #tpu.memory_space<vmem>>, vector<16x1xf32>,
      %c0_15 = arith.constant 0 : index
      %c0_16 = arith.constant 0 : index
      %24 = vector.load %arg7[%c0_15, %c0_16] : memref<16x1xf32, #tpu.memory_space<vmem>>, vector<16x1xf32>
      %25 = arith.mulf %2, %2 : vector<16x128xf32>
      %cst_17 = arith.constant dense<0.000000e+00> : vector<16xf32>
      %26 = vector.multi_reduction <add>, %25, %cst_17 [1] : vector<16x128xf32> to vector<16xf32>
      %27 = vector.shape_cast %26 : vector<16xf32> to vector<16x1xf32>
      %28 = arith.addf %24, %27 : vector<16x1xf32>
      %c0_18 = arith.constant 0 : index
      %c0_19 = arith.constant 0 : index
      %29 = vector.load %arg7[%c0_18, %c0_19] : memref<16x1xf32, #tpu.memory_space<vmem>>, vector<16x1xf32>
      tpu.vector_store %arg7[%c0_18, %c0_19], %28 {strides = array<i32>} : memref<16x1xf32, #tpu.memory_space<vmem>>, vector<16x1xf32>,
    } else {
    }
    %c0_i32_7 = arith.constant 0 : i32
    %11 = arith.cmpi eq, %arg0, %c0_i32_7 : i32
    %c3_i32 = arith.constant 3 : i32
    %12 = arith.cmpi eq, %arg1, %c3_i32 : i32
    %13 = arith.andi %11, %12 : i1
    %14 = arith.extui %13 : i1 to i32
    %c0_i32_8 = arith.constant 0 : i32
    %15 = arith.cmpi ne, %14, %c0_i32_8 : i32
    scf.if %15 {
      %c0_10 = arith.constant 0 : index
      %c0_11 = arith.constant 0 : index
      %19 = vector.load %arg6[%c0_10, %c0_11] : memref<16x1xf32, #tpu.memory_space<vmem>>, vector<16x1xf32>
      %cst_12 = arith.constant 0.001953125 : f32
      %20 = vector.broadcast %cst_12 : f32 to vector<16x1xf32>
      %21 = arith.mulf %19, %20 : vector<16x1xf32>
      %c0_13 = arith.constant 0 : index
      %c0_14 = arith.constant 0 : index
      %22 = vector.load %arg7[%c0_13, %c0_14] : memref<16x1xf32, #tpu.memory_space<vmem>>, vector<16x1xf32>
      %cst_15 = arith.constant 0.001953125 : f32
      %23 = vector.broadcast %cst_15 : f32 to vector<16x1xf32>
      %24 = arith.mulf %22, %23 : vector<16x1xf32>
      %25 = arith.mulf %21, %21 : vector<16x1xf32>
      %26 = arith.subf %24, %25 : vector<16x1xf32>
      %cst_16 = arith.constant 0.000000e+00 : f32
      %27 = vector.broadcast %cst_16 : f32 to vector<16x1xf32>
      %28 = arith.maximumf %26, %27 : vector<16x1xf32>
      %c0_17 = arith.constant 0 : index
      %c0_18 = arith.constant 0 : index
      %29 = vector.load %arg4[%c0_17, %c0_18] : memref<16x3xf32, #tpu.memory_space<vmem>>, vector<16x1xf32>
      %c0_19 = arith.constant 0 : index
      %c1 = arith.constant 1 : index
      %30 = vector.load %arg4[%c0_19, %c1] : memref<16x3xf32, #tpu.memory_space<vmem>>, vector<16x1xf32>
      %cst_20 = arith.constant 9.99999974E-6 : f32
      %31 = vector.broadcast %cst_20 : f32 to vector<16x1xf32>
      %32 = arith.addf %28, %31 : vector<16x1xf32>
      %33 = math.rsqrt %32 : vector<16x1xf32>
      %34 = arith.mulf %29, %33 : vector<16x1xf32>
      %c0_21 = arith.constant 0 : index
      %c0_22 = arith.constant 0 : index
      %35 = vector.load %arg8[%c0_21, %c0_22] : memref<16x1xf32, #tpu.memory_space<vmem>>, vector<16x1xf32>
      tpu.vector_store %arg8[%c0_21, %c0_22], %34 {strides = array<i32>} : memref<16x1xf32, #tpu.memory_space<vmem>>, vector<16x1xf32>,
      %36 = arith.mulf %21, %34 : vector<16x1xf32>
      %37 = arith.subf %30, %36 : vector<16x1xf32>
      %c0_23 = arith.constant 0 : index
      %c0_24 = arith.constant 0 : index
      %38 = vector.load %arg9[%c0_23, %c0_24] : memref<16x1xf32, #tpu.memory_space<vmem>>, vector<16x1xf32>
      tpu.vector_store %arg9[%c0_23, %c0_24], %37 {strides = array<i32>} : memref<16x1xf32, #tpu.memory_space<vmem>>, vector<16x1xf32>,
    } else {
    }
    %c1_i32 = arith.constant 1 : i32
    %16 = arith.cmpi eq, %arg0, %c1_i32 : i32
    %17 = arith.extui %16 : i1 to i32
    %c0_i32_9 = arith.constant 0 : i32
    %18 = arith.cmpi ne, %17, %c0_i32_9 : i32
    scf.if %18 {
      %c0_10 = arith.constant 0 : index
      %c2 = arith.constant 2 : index
      %19 = vector.load %arg4[%c0_10, %c2] : memref<16x3xf32, #tpu.memory_space<vmem>>, vector<16x1xf32>
      %c0_11 = arith.constant 0 : index
      %c0_12 = arith.constant 0 : index
      %20 = vector.load %arg8[%c0_11, %c0_12] : memref<16x1xf32, #tpu.memory_space<vmem>>, vector<16x1xf32>
      %21 = vector.broadcast %20 : vector<16x1xf32> to vector<16x128xf32>
      %22 = arith.mulf %2, %21 : vector<16x128xf32>
      %c0_13 = arith.constant 0 : index
      %c0_14 = arith.constant 0 : index
      %23 = vector.load %arg9[%c0_13, %c0_14] : memref<16x1xf32, #tpu.memory_space<vmem>>, vector<16x1xf32>
      %24 = vector.broadcast %23 : vector<16x1xf32> to vector<16x128xf32>
      %25 = arith.addf %22, %24 : vector<16x128xf32>
      %cst_15 = arith.constant 0.000000e+00 : f32
      %26 = vector.broadcast %cst_15 : f32 to vector<16x128xf32>
      %27 = arith.cmpf ogt, %25, %26 : vector<16x128xf32>
      %28 = vector.broadcast %19 : vector<16x1xf32> to vector<16x128xf32>
      %29 = arith.mulf %28, %25 : vector<16x128xf32>
      %30 = arith.select %27, %25, %29 : vector<16x128xi1>, vector<16x128xf32>
      %c0_16 = arith.constant 0 : index
      %c0_17 = arith.constant 0 : index
      %31 = vector.load %arg5[%c0_16, %c0_17] : memref<16x128xf32, #tpu.memory_space<vmem>>, vector<16x128xf32>
      tpu.vector_store %arg5[%c0_16, %c0_17], %30 {strides = array<i32>} : memref<16x128xf32, #tpu.memory_space<vmem>>, vector<16x128xf32>,
    } else {
    }
    return
  }
  func.func @transform_0(%arg0: i32, %arg1: i32) -> (i32, i32) {
    %c0_i32 = arith.constant 0 : i32
    %c0_i32_0 = arith.constant 0 : i32
    return %c0_i32, %arg1 : i32, i32
  }
  func.func @transform_1(%arg0: i32, %arg1: i32) -> (i32, i32) {
    %c0_i32 = arith.constant 0 : i32
    %c0_i32_0 = arith.constant 0 : i32
    %c0_i32_1 = arith.constant 0 : i32
    return %c0_i32, %c0_i32_0 : i32, i32
  }
  func.func @transform_2(%arg0: i32, %arg1: i32) -> (i32, i32) {
    %c0_i32 = arith.constant 0 : i32
    %c0_i32_0 = arith.constant 0 : i32
    %c0_i32_1 = arith.constant 0 : i32
    return %c0_i32, %c0_i32_0 : i32, i32
  }
  func.func @transform_3(%arg0: i32, %arg1: i32) -> (i32, i32) {
    %0 = arith.muli %arg1, %arg0 : i32
    %c0_i32 = arith.constant 0 : i32
    %c0_i32_0 = arith.constant 0 : i32
    return %c0_i32, %0 : i32, i32
  }
}

</mosaic_0001>

<llo_original>
// kernel: tpu_custom_call.1
$region0: #{tpu_custom_call.1}
  #allocation0 [shape = 'u32[]', space=smem, size = 0x4, offset = 0x4, fixed_abs, tag = 'smem constant byte address 0x4 - core index']
  #allocation1 [shape = 'u32[144,128]{1,0:T(1,128)}', space=vmem, size = 0x12000, scoped, tag = 'internal scratch']
  #allocation2 [shape = 'f32[16,1]{1,0:T(8,128)}', space=vmem, size = 0x2000, scoped, tag = 'scratch operand']
  #allocation3 [shape = 'f32[16,1]{1,0:T(8,128)}', space=vmem, size = 0x2000, scoped, tag = 'scratch operand']
  #allocation4 [shape = 'f32[16,1]{1,0:T(8,128)}', space=vmem, size = 0x2000, scoped, tag = 'scratch operand']
  #allocation5 [shape = 'f32[16,1]{1,0:T(8,128)}', space=vmem, size = 0x2000, scoped, tag = 'scratch operand']
  %s0 = inlined_call_operand.hbm [shape: bf16[36,512], index: 0, kind: input, shape index: {}]
  %s1 = inlined_call_operand.vmem [shape: bf16[16,36], index: 1, kind: input, shape index: {}]
  %s2 = inlined_call_operand.vmem [shape: f32[16,3], index: 2, kind: input, shape index: {}]
  %s3 = inlined_call_operand.hbm [shape: f32[16,512], index: 3, kind: output, shape index: {}]
  %s4 = sld [smem:[#allocation0]]
  $region65: #{tpu_custom_call.1} parent=0
    _
  %s6 = ssub.s32 1, %s4
  %s7 = scalar_select 0, %s6, %s4
  $region1: #{tpu_custom_call.1} parent=0
    #allocation6 [shape = 'u8[20480]{0}', space=vmem, size = 0x5000, scoped, tag = 'input window, operand 0']
    #allocation7 [shape = 's32[2]{0}', space=sflag, size = 0x8, scoped, tag = 'scoped memory for tpu_custom_call.1']
    #allocation8 [shape = 's32[2]{0}', space=sflag, size = 0x8, scoped, tag = 'scoped memory for tpu_custom_call.1']
    #allocation9 [shape = 'u8[16384]{0}', space=vmem, size = 0x4000, scoped, tag = 'output window, operand 0']
    %8 = vsyncpa [#allocation7], 0
    %s9 = scalar_lea.sflag [#allocation7], 1
    %10 = vsyncpa %s9, 0
    %11 = vsyncpa [#allocation8], 0
    %s12 = scalar_lea.sflag [#allocation8], 1
    %13 = vsyncpa %s12, 0
    loop: start=0, step=1, limit=10
    $region2: #{tpu_custom_call.1} parent=1 // loop_pre_header
      _
    $region3: #{tpu_custom_call.1} parent=1 // loop_header
      %s15 = sphi 0, %s19
      %p16 = scmp.ge.s32.totalorder %s15, 10
      %s22 = sphi 0, %s34
      %s23 = sphi 0, %s30
      %s24 = sphi 0, %s22
      %s25 = sphi 0, %s23
      %s26 = sphi 0, %s24
      %s27 = sphi 0, %s25
      %s37 = sphi 0, %s39
      %s40 = sphi 0, %s37
      %s41 = sphi 0, %s40
      %s57 = sphi 0, %s41
      %s61 = sphi 0, %s61
      %s63 = sphi 0, %s61
      %s64 = sphi 0, %s63
      %s78 = sphi 0, %s64
      %s82 = sphi 0, %s82
      %s84 = sphi 0, %s82
      %s85 = sphi 0, %s84
      %s99 = sphi 0, %s85
      %s107 = sphi 0, %s109
      %s110 = sphi 0, %s107
      %s111 = sphi 0, %s110
      %s127 = sphi 0, %s111
    $region4: #{tpu_custom_call.1} parent=1 // loop_header_branch
      %18 = sbr.rel (%p16) target = $region8
    $region5: #{tpu_custom_call.1} parent=1 // loop_body
      %s20 = ssub.s32 %s15, 1
      %s21 = ssub.s32 %s15, 2
      %s28 = sadd.s32 1, %s23
      %p29 = scmp.ge.s32.totalorder %s28, 4
      %s30 = scalar_select %p29, 0, %s28
      %s31 = sadd.s32 1, %s22
      %s32 = scalar_select %p29, %s31, %s22
      %p33 = scmp.ge.s32.totalorder %s32, 2
      %s34 = scalar_select %p33, 0, %s32
      %s35 = ssub.s32 %s23, %s30
      %p36 = scmp.eq.s32.totalorder %s35, 0
      %s38 = sadd.s32 %s37, 1
      %s39 = scalar_select %p36, %s37, %s38
      %p42 = pneg %p36
      %p43 = scmp.eq.s32.totalorder %s15, 7
      %p44 = por %p42, %p43
      %p45 = scmp.ne.s32.totalorder %s37, %s40
      %p46 = scmp.eq.s32.totalorder %s15, 0
      %p47 = por %p45, %p46
      %p48 = scmp.ne.s32.totalorder %s37, %s40
      %p49 = scmp.eq.s32.totalorder %s20, 7
      %p50 = por %p48, %p49
      %p51 = scmp.ne.s32.totalorder %s40, %s41
      %p52 = scmp.eq.s32.totalorder %s20, 0
      %p53 = por %p51, %p52
      %p54 = scmp.ne.s32.totalorder %s40, %s41
      %p55 = scmp.eq.s32.totalorder %s21, 7
      %p56 = por %p54, %p55
      %p58 = scmp.ne.s32.totalorder %s41, %s57
      %p59 = scmp.eq.s32.totalorder %s21, 0
      %p60 = por %p58, %p59
      %s62 = sadd.s32 %s61, 1
      %p65 = scmp.eq.s32.totalorder %s15, 7
      %p66 = scmp.ne.s32.totalorder %s61, %s63
      %p67 = scmp.eq.s32.totalorder %s15, 0
      %p68 = por %p66, %p67
      %p69 = scmp.ne.s32.totalorder %s61, %s63
      %p70 = scmp.eq.s32.totalorder %s20, 7
      %p71 = por %p69, %p70
      %p72 = scmp.ne.s32.totalorder %s63, %s64
      %p73 = scmp.eq.s32.totalorder %s20, 0
      %p74 = por %p72, %p73
      %p75 = scmp.ne.s32.totalorder %s63, %s64
      %p76 = scmp.eq.s32.totalorder %s21, 7
      %p77 = por %p75, %p76
      %p79 = scmp.ne.s32.totalorder %s64, %s78
      %p80 = scmp.eq.s32.totalorder %s21, 0
      %p81 = por %p79, %p80
      %s83 = sadd.s32 %s82, 1
      %p86 = scmp.eq.s32.totalorder %s15, 7
      %p87 = scmp.ne.s32.totalorder %s82, %s84
      %p88 = scmp.eq.s32.totalorder %s15, 0
      %p89 = por %p87, %p88
      %p90 = scmp.ne.s32.totalorder %s82, %s84
      %p91 = scmp.eq.s32.totalorder %s20, 7
      %p92 = por %p90, %p91
      %p93 = scmp.ne.s32.totalorder %s84, %s85
      %p94 = scmp.eq.s32.totalorder %s20, 0
      %p95 = por %p93, %p94
      %p96 = scmp.ne.s32.totalorder %s84, %s85
      %p97 = scmp.eq.s32.totalorder %s21, 7
      %p98 = por %p96, %p97
      %p100 = scmp.ne.s32.totalorder %s85, %s99
      %p101 = scmp.eq.s32.totalorder %s21, 0
      %p102 = por %p100, %p101
      %s103 = smul.u32 %s23, %s22
      %s104 = smul.u32 %s30, %s34
      %s105 = ssub.s32 %s103, %s104
      %p106 = scmp.eq.s32.totalorder %s105, 0
      %s108 = sadd.s32 %s107, 1
      %s109 = scalar_select %p106, %s107, %s108
      %p112 = pneg %p106
      %p113 = scmp.eq.s32.totalorder %s15, 7
      %p114 = por %p112, %p113
      %p115 = scmp.ne.s32.totalorder %s107, %s110
      %p116 = scmp.eq.s32.totalorder %s15, 0
      %p117 = por %p115, %p116
      %p118 = scmp.ne.s32.totalorder %s107, %s110
      %p119 = scmp.eq.s32.totalorder %s20, 7
      %p120 = por %p118, %p119
      %p121 = scmp.ne.s32.totalorder %s110, %s111
      %p122 = scmp.eq.s32.totalorder %s20, 0
      %p123 = por %p121, %p122
      %p124 = scmp.ne.s32.totalorder %s110, %s111
      %p125 = scmp.eq.s32.totalorder %s21, 7
      %p126 = por %p124, %p125
      %p128 = scmp.ne.s32.totalorder %s111, %s127
      %p129 = scmp.eq.s32.totalorder %s21, 0
      %p130 = por %p128, %p129
      %p131 = scmp.le.s32.totalorder 1, %s15
      %p132 = scmp.lt.s32.totalorder %s15, 9
      %p133 = pnand %p131, %p132
      %p134 = pneg %p133
      // Predicated region
      $region9: #{tpu_custom_call.1} parent=5 // pred_check
        _
      $region10: #{tpu_custom_call.1} parent=5 // pred_check_branch
        %136 = sbr.rel (%p133) target = $region12
      $region11: #{tpu_custom_call.1} parent=5 // pred_region
        %s137 = ssub.s32 %s15, 1
        // Predicated region
        $region13: #{tpu_custom_call.1} parent=11 // pred_check
          %p138 = pneg %p74
        $region14: #{tpu_custom_call.1} parent=11 // pred_check_branch
          %140 = sbr.rel (%p138) target = $region16
        $region15: #{tpu_custom_call.1} parent=11 // pred_region
          _
        $region16: #{tpu_custom_call.1} parent=11 // pred_fallthru
          _
        // Predicated region
        $region17: #{tpu_custom_call.1} parent=11 // pred_check
          %p141 = pneg %p95
        $region18: #{tpu_custom_call.1} parent=11 // pred_check_branch
          %143 = sbr.rel (%p141) target = $region20
        $region19: #{tpu_custom_call.1} parent=11 // pred_region
          _
        $region20: #{tpu_custom_call.1} parent=11 // pred_fallthru
          _
      $region12: #{tpu_custom_call.1} parent=5 // pred_fallthru
        _
      %p144 = scmp.lt.s32.totalorder %s15, 8
      // Predicated region
      $region21: #{tpu_custom_call.1} parent=5 // pred_check
        %p145 = pneg %p144
      $region22: #{tpu_custom_call.1} parent=5 // pred_check_branch
        %147 = sbr.rel (%p145) target = $region24
      $region23: #{tpu_custom_call.1} parent=5 // pred_region
        // Predicated region
        $region25: #{tpu_custom_call.1} parent=23 // pred_check
          %p148 = pneg %p47
        $region26: #{tpu_custom_call.1} parent=23 // pred_check_branch
          %150 = sbr.rel (%p148) target = $region28
        $region27: #{tpu_custom_call.1} parent=23 // pred_region
          %s151 = sand.u32 %s37, 1
          %s152 = scalar_lea.sflag [#allocation7], %s151
          %s153 = sand.u32 %s37, 1
          %s154 = smul.addr %s153, 20
          %s155 = scalar_lea.vmem [#allocation6], %s154
          %s157 = ssub.s32 320, 320
          %158 = vsyncadd %s152, %s157
          %s159 = smul.addr %s23, 64
          %s160 = scalar_lea.hbm %s0, %s159
          %s161 = sshll.u32 %s155, 4
          %s162 = int_to_ptr.vmem [resolvable:$true] %s161
          %167 = dma.hbm_to_vmem [thread:$0]  %s160, 320, %s162, %s152, 256, 64, 4
        $region28: #{tpu_custom_call.1} parent=23 // pred_fallthru
          _
      $region24: #{tpu_custom_call.1} parent=5 // pred_fallthru
        _
      %p168 = scmp.le.s32.totalorder 1, %s15
      %p169 = scmp.lt.s32.totalorder %s15, 9
      %p170 = pnand %p168, %p169
      %p171 = pneg %p170
      // Predicated region
      $region29: #{tpu_custom_call.1} parent=5 // pred_check
        _
      $region30: #{tpu_custom_call.1} parent=5 // pred_check_branch
        %173 = sbr.rel (%p170) target = $region32
      $region31: #{tpu_custom_call.1} parent=5 // pred_region
        %s174 = ssub.s32 %s15, 1
        %s175 = sand.u32 %s40, 1
        %s176 = scalar_lea.sflag [#allocation7], %s175
        %s177 = sand.u32 %s40, 1
        %s178 = smul.addr %s177, 20
        %s179 = scalar_lea.vmem [#allocation6], %s178
        // Predicated region
        $region33: #{tpu_custom_call.1} parent=31 // pred_check
          %p180 = pneg %p53
        $region34: #{tpu_custom_call.1} parent=31 // pred_check_branch
          %182 = sbr.rel (%p180) target = $region36
        $region35: #{tpu_custom_call.1} parent=31 // pred_region
          %183 = dma.done %s176, 320
        $region36: #{tpu_custom_call.1} parent=31 // pred_fallthru
          _
        %s184 = sand.u32 %s40, 1
        %s185 = scalar_lea.sflag [#allocation7], %s184
        %s186 = sand.u32 %s40, 1
        %s187 = smul.addr %s186, 20
        %s188 = scalar_lea.vmem [#allocation6], %s187
        %p189 = pneg %p53
        %p190 = pneg %p50
        %p191 = pneg %p74
        %p192 = pneg %p71
        %p193 = pneg %p95
        %p194 = pneg %p92
        %p195 = pneg %p123
        %p196 = pneg %p120
        %s197 = sand.u32 %s110, 1
        %s198 = scalar_lea.sflag [#allocation8], %s197
        %s199 = sand.u32 %s110, 1
        %s200 = smul.addr %s199, 16
        %s201 = scalar_lea.vmem [#allocation9], %s200
        %s202 = smul.u32 %s25, %s24
        %v204 = vld [vmem:[%s1] sm:$0xf]
        %v205 = vld [vmem:[%s1 + $0x4] sm:$0xf]
        %v206 = vld [vmem:[%s179] sm:$0xf]
        %v207 = vld [vmem:[%s179 + $0x4] sm:$0xf]
        %v208 = vld [vmem:[%s179 + $0x8] sm:$0xf]
        %v209 = vld [vmem:[%s179 + $0xc] sm:$0xf]
        %v210 = vld [vmem:[%s179 + $0x10] sm:$0x3]
        %v213 = vunpack.c.l.b16 %v204
        %v214 = vunpack.c.l.b16 %v205
        %v215 = vpack.c.b16 %v214, %v213
        %v221 = vunpack.c.l.b16 %v206
        %v222 = vunpack.c.l.b16 %v207
        %v223 = vunpack.c.l.b16 %v208
        %v224 = vunpack.c.l.b16 %v209
        %v225 = vunpack.c.l.b16 %v210
        %v226 = vpack.c.b16 %v222, %v221
        %v227 = vpack.c.b16 %v224, %v223
        %v228 = vpack.c.b16 %v225, %v225
        %vm231 = vcmask 293888
        %v233 = vsel %vm231, %v215, 0
        %vm235 = vcmask 1041408
        %v237 = vsel %vm235, %v228, 0
        %239 = vmatprep.subr.bf16.mxu0 0
        %240 = vmatpush1.bf16.msra.mxu0 %v226
        %241 = vmatprep.subr.bf16.mxu0 0
        %242 = vmatpush1.bf16.msra.mxu0 %v227
        %243 = vmatprep.subr.bf16.mxu0 0
        %244 = vmatpush1.bf16.msra.mxu0 %v237
        %245 = vmatprep.subr.bf16.mxu0 0
        %246 = vmatpush1.bf16.msra.mxu0 0
        %247 = vmatprep.subr.bf16.mxu0 0
        %248 = vmatpush1.bf16.msra.mxu0 0
        %249 = vmatprep.subr.bf16.mxu0 0
        %250 = vmatpush1.bf16.msra.mxu0 0
        %251 = vmatprep.subr.bf16.mxu0 0
        %252 = vmatpush1.bf16.msra.mxu0 0
        %253 = vmatprep.subr.bf16.mxu0 0
        %254 = vmatpush1.bf16.msra.mxu0 0
        %255 = vmatprep.subr.bf16.mxu0 0
        %256 = vmatpush1.bf16.msra.mxu0 0
        %257 = vmatprep.subr.bf16.mxu0 0
        %258 = vmatpush1.bf16.msra.mxu0 0
        %259 = vmatprep.subr.bf16.mxu0 0
        %260 = vmatpush1.bf16.msra.mxu0 0
        %261 = vmatprep.subr.bf16.mxu0 0
        %262 = vmatpush1.bf16.msra.mxu0 0
        %263 = vmatprep.subr.bf16.mxu0 0
        %264 = vmatpush1.bf16.msra.mxu0 0
        %265 = vmatprep.subr.bf16.mxu0 0
        %266 = vmatpush1.bf16.msra.mxu0 0
        %267 = vmatprep.subr.bf16.mxu0 0
        %268 = vmatpush1.bf16.msra.mxu0 0
        %269 = vmatprep.subr.bf16.mxu0 0
        %270 = vmatpush1.bf16.msra.mxu0 0
        %271 = vmatprep.mubr.bf16.mxu0 0
        %272 = vmatmul.mubr.bf16.gmra.mrb[0].mxu0 %v233
        %v273 = vpop.f32.mrb[0].mxu0
        %v274 = vadd.f32 0.0, %v273
        %v275 = vpop.f32.mrb[0].mxu0
        %v276 = vpop.f32.mrb[0].mxu0
        %v277 = vadd.f32 0.0, %v276
        %v278 = vpop.f32.mrb[0].mxu0
        %279 = vdwg.mxu0
        %p280 = scmp.eq.s32.totalorder %s24, 0
        %p281 = scmp.eq.s32.totalorder %s25, 0
        %p282 = pnand %p280, %p281
        %p283 = pneg %p282
        // Predicated region
        $region37: #{tpu_custom_call.1} parent=31 // pred_check
          _
        $region38: #{tpu_custom_call.1} parent=31 // pred_check_branch
          %285 = sbr.rel (%p282) target = $region40
        $region39: #{tpu_custom_call.1} parent=31 // pred_region
          %vm286 = vcmask 7168
          %287 = vst.msk [vmem:[#allocation2] sm:$0xff] %vm286, 0.0
          %288 = vst.msk [vmem:[#allocation2 + $0x8] sm:$0xff] %vm286, 0.0
          %289 = vst.msk [vmem:[#allocation3] sm:$0xff] %vm286, 0.0
          %290 = vst.msk [vmem:[#allocation3 + $0x8] sm:$0xff] %vm286, 0.0
        $region40: #{tpu_custom_call.1} parent=31 // pred_fallthru
          _
        // Predicated region
        $region41: #{tpu_custom_call.1} parent=31 // pred_check
          %p291 = pneg %p280
        $region42: #{tpu_custom_call.1} parent=31 // pred_check_branch
          %293 = sbr.rel (%p291) target = $region44
        $region43: #{tpu_custom_call.1} parent=31 // pred_region
          %v294 = vld [vmem:[#allocation2] sm:$0xff]
          %v295 = vld [vmem:[#allocation2 + $0x8] sm:$0xff]
          %296 = vadd.xlane.f32.xlu0 %v274
          %v297 = vpop.xlane.xlu0 %296
          %298 = vadd.xlane.f32.xlu0 %v277
          %v299 = vpop.xlane.xlu0 %298
          %v300 = vadd.f32 %v294, %v297
          %v301 = vadd.f32 %v295, %v299
          %vm302 = vcmask 7168
          %303 = vst.msk [vmem:[#allocation2] sm:$0xff] %vm302, %v300
          %304 = vst.msk [vmem:[#allocation2 + $0x8] sm:$0xff] %vm302, %v301
          %v305 = vld [vmem:[#allocation3] sm:$0xff]
          %v306 = vld [vmem:[#allocation3 + $0x8] sm:$0xff]
          %v307 = vmul.f32 %v274, %v274
          %v308 = vmul.f32 %v277, %v277
          %309 = vadd.xlane.f32.xlu0 %v307
          %v310 = vpop.xlane.xlu0 %309
          %311 = vadd.xlane.f32.xlu0 %v308
          %v312 = vpop.xlane.xlu0 %311
          %v313 = vadd.f32 %v305, %v310
          %v314 = vadd.f32 %v306, %v312
          %315 = vst.msk [vmem:[#allocation3] sm:$0xff] %vm302, %v313
          %316 = vst.msk [vmem:[#allocation3 + $0x8] sm:$0xff] %vm302, %v314
        $region44: #{tpu_custom_call.1} parent=31 // pred_fallthru
          _
        %p317 = scmp.eq.s32.totalorder %s25, 3
        %p318 = pnand %p280, %p317
        %p319 = pneg %p318
        // Predicated region
        $region45: #{tpu_custom_call.1} parent=31 // pred_check
          _
        $region46: #{tpu_custom_call.1} parent=31 // pred_check_branch
          %321 = sbr.rel (%p318) target = $region48
        $region47: #{tpu_custom_call.1} parent=31 // pred_region
          %v322 = vld [vmem:[#allocation2] sm:$0xff]
          %v323 = vld [vmem:[#allocation2 + $0x8] sm:$0xff]
          %v324 = vmul.f32 %v322, 0.001953125
          %v325 = vmul.f32 %v323, 0.001953125
          %v326 = vld [vmem:[#allocation3] sm:$0xff]
          %v327 = vld [vmem:[#allocation3 + $0x8] sm:$0xff]
          %v328 = vmul.f32 %v326, 0.001953125
          %v329 = vmul.f32 %v327, 0.001953125
          %v330 = vmul.f32 %v324, %v324
          %v331 = vmul.f32 %v325, %v325
          %v332 = vsub.f32 %v328, %v330
          %v333 = vsub.f32 %v329, %v331
          %v334 = vmax.f32 %v332, 0.0
          %v335 = vmax.f32 %v333, 0.0
          %v336 = vld [vmem:[%s2] sm:$0xff]
          %v337 = vld [vmem:[%s2 + $0x8] sm:$0xff]
          %v338 = vadd.f32 %v334, 1e-05
          %v339 = vadd.f32 %v335, 1e-05
          %v340 = vrsqrt.pop %v338
          %v341 = vrsqrt.pop %v339
          %v342 = vmul.f32 %v336, %v340
          %v343 = vmul.f32 %v337, %v341
          %vm344 = vcmask 7168
          %345 = vst.msk [vmem:[#allocation4] sm:$0xff] %vm344, %v342
          %346 = vst.msk [vmem:[#allocation4 + $0x8] sm:$0xff] %vm344, %v343
          %v347 = vmul.f32 %v324, %v342
          %v348 = vmul.f32 %v325, %v343
          %351 = vrot.lane.b32.xlu0 %v347, 1
          %v352 = vpop.permute.xlu0 %351
          %353 = vrot.lane.b32.xlu0 %v348, 1
          %v354 = vpop.permute.xlu0 %353
          %v357 = vsub.f32 %v336, %v352
          %v358 = vsub.f32 %v337, %v354
          %361 = vrot.lane.b32.xlu0 %v357, 127
          %v362 = vpop.permute.xlu0 %361
          %363 = vrot.lane.b32.xlu0 %v358, 127
          %v364 = vpop.permute.xlu0 %363
          %367 = vst.msk [vmem:[#allocation5] sm:$0xff] %vm344, %v362
          %368 = vst.msk [vmem:[#allocation5 + $0x8] sm:$0xff] %vm344, %v364
        $region48: #{tpu_custom_call.1} parent=31 // pred_fallthru
          _
        %p369 = scmp.eq.s32.totalorder %s24, 1
        // Predicated region
        $region49: #{tpu_custom_call.1} parent=31 // pred_check
          %p370 = pneg %p369
        $region50: #{tpu_custom_call.1} parent=31 // pred_check_branch
          %372 = sbr.rel (%p370) target = $region52
        $region51: #{tpu_custom_call.1} parent=31 // pred_region
          %v373 = vld [vmem:[%s2] sm:$0xff]
          %v374 = vld [vmem:[%s2 + $0x8] sm:$0xff]
          %v375 = vld [vmem:[#allocation4] sm:$0xff]
          %v376 = vld [vmem:[#allocation4 + $0x8] sm:$0xff]
          %378 = vset.pattern.permute.xlu0 0
          %379 = vperm.xlu0 %378, %v375
          %v380 = vpop.permute.xlu0 %379
          %383 = vset.pattern.permute.xlu0 0
          %384 = vperm.xlu0 %383, %v376
          %v385 = vpop.permute.xlu0 %384
          %v387 = vmul.f32 %v274, %v380
          %v388 = vmul.f32 %v277, %v385
          %v389 = vld [vmem:[#allocation5] sm:$0xff]
          %v390 = vld [vmem:[#allocation5 + $0x8] sm:$0xff]
          %392 = vset.pattern.permute.xlu0 0
          %393 = vperm.xlu0 %392, %v389
          %v394 = vpop.permute.xlu0 %393
          %397 = vset.pattern.permute.xlu0 0
          %398 = vperm.xlu0 %397, %v390
          %v399 = vpop.permute.xlu0 %398
          %v401 = vadd.f32 %v387, %v394
          %v402 = vadd.f32 %v388, %v399
          %vm403 = vcmp.gt.f32.partialorder %v401, 0.0
          %vm404 = vcmp.gt.f32.partialorder %v402, 0.0
          %406 = vset.pattern.permute.xlu0 2
          %407 = vperm.xlu0 %406, %v373
          %v408 = vpop.permute.xlu0 %407
          %411 = vset.pattern.permute.xlu0 2
          %412 = vperm.xlu0 %411, %v374
          %v413 = vpop.permute.xlu0 %412
          %v415 = vmul.f32 %v408, %v401
          %v416 = vmul.f32 %v413, %v402
          %v417 = vsel %vm403, %v401, %v415
          %v418 = vsel %vm404, %v402, %v416
          %419 = vst [vmem:[%s201] sm:$0xff] %v417
          %420 = vst [vmem:[%s201 + $0x8] sm:$0xff] %v418
        $region52: #{tpu_custom_call.1} parent=31 // pred_fallthru
          _
        %s421 = sand.u32 %s110, 1
        %s422 = scalar_lea.sflag [#allocation8], %s421
        %s423 = sand.u32 %s110, 1
        %s424 = smul.addr %s423, 16
        %s425 = scalar_lea.vmem [#allocation9], %s424
        // Predicated region
        $region53: #{tpu_custom_call.1} parent=31 // pred_check
          %p426 = pneg %p120
        $region54: #{tpu_custom_call.1} parent=31 // pred_check_branch
          %428 = sbr.rel (%p426) target = $region56
        $region55: #{tpu_custom_call.1} parent=31 // pred_region
          %s429 = smul.u32 %s25, %s24
          %s431 = ssub.s32 256, 256
          %432 = vsyncadd %s422, %s431
          %s433 = smul.addr %s429, 128
          %s434 = scalar_lea.hbm %s3, %s433
          %s435 = sshll.u32 %s425, 4
          %s436 = int_to_ptr.vmem [resolvable:$true] %s435
          %441 = dma.vmem_to_hbm [thread:$0]  %s436, 256, %s434, %s422, 128, 512, 8
        $region56: #{tpu_custom_call.1} parent=31 // pred_fallthru
          _
      $region32: #{tpu_custom_call.1} parent=5 // pred_fallthru
        _
      %p442 = scmp.le.s32.totalorder 2, %s15
      // Predicated region
      $region57: #{tpu_custom_call.1} parent=5 // pred_check
        %p443 = pneg %p442
      $region58: #{tpu_custom_call.1} parent=5 // pred_check_branch
        %445 = sbr.rel (%p443) target = $region60
      $region59: #{tpu_custom_call.1} parent=5 // pred_region
        %s446 = ssub.s32 %s15, 2
        // Predicated region
        $region61: #{tpu_custom_call.1} parent=59 // pred_check
          %p447 = pneg %p126
        $region62: #{tpu_custom_call.1} parent=59 // pred_check_branch
          %449 = sbr.rel (%p447) target = $region64
        $region63: #{tpu_custom_call.1} parent=59 // pred_region
          %s450 = sand.u32 %s111, 1
          %s451 = scalar_lea.sflag [#allocation8], %s450
          %s452 = sand.u32 %s111, 1
          %s453 = smul.addr %s452, 16
          %s454 = scalar_lea.vmem [#allocation9], %s453
          %455 = dma.done %s451, 256
        $region64: #{tpu_custom_call.1} parent=59 // pred_fallthru
          _
      $region60: #{tpu_custom_call.1} parent=5 // pred_fallthru
        _
    $region6: #{tpu_custom_call.1} parent=1 // loop_footer
      %s19 = sadd.s32 1, %s15
    $region7: #{tpu_custom_call.1} parent=1 // loop_footer_branch
      %14 = sbr.rel target = $region3
    $region8: #{tpu_custom_call.1} parent=1 // loop_exit
      _
    %456 = vsyncpa [#allocation7], 1
    %s457 = scalar_lea.sflag [#allocation7], 1
    %458 = vsyncpa %s457, 1
    %459 = vsyncpa [#allocation8], 1
    %s460 = scalar_lea.sflag [#allocation8], 1
    %461 = vsyncpa %s460, 1

</llo_original>
